<compile_context>
chip_gen: v7x
topology: tpu7x:2x2x1
jax: 0.10.0
libtpu: 0.0.40
codegen_flags: <defaults>
</compile_context>

<pallas_src>
import jax
import jax.numpy as jnp
from jax import lax
from jax.experimental import pallas as pl
from jax.experimental.pallas import tpu as pltpu

EPS = 1e-5


# ---------------------------------------------------------------------------
# Pass A: circular Conv1d(k=3, pad=2) as ONE bf16 im2col matmul per grid step,
#         plus per-group BatchNorm partial statistics (f32).
# ---------------------------------------------------------------------------
def conv_kernel(x_ref, w_ref, y_ref, sum_ref, m2_ref):
    """x_ref:   [Bt, L, C]  input slab (channels last)
       w_ref:   [3*C, C]    bf16 im2col weight, rows tap-major (k=0 c_in..., k=1..., k=2...)
       y_ref:   [Bt*L, C]   bf16 conv output rows 0..L-1 per batch (wrap rows dropped)
       sum_ref: [1, C]      f32 per-group sum   (wrap rows 0,1 counted twice)
       m2_ref:  [1, C]      f32 per-group centered sum of squares (same multiset)
    """
    Bt, L, C = x_ref.shape
    x = x_ref[...]
    # Output position i needs x[(i-2)%L], x[(i-1)%L], x[i] (circular).
    # jnp.roll(x, s, 1)[:, i, :] == x[:, (i-s)%L, :]; static shift -> slices+concat.
    xk = jnp.concatenate(
        [jnp.roll(x, 2, axis=1), jnp.roll(x, 1, axis=1), x], axis=-1)   # [Bt, L, 3C]
    # Leading-dim merge is layout-free (L % 8 == 0, C is the lane dim).
    xk = xk.reshape(Bt * L, 3 * C).astype(jnp.bfloat16)
    y = jnp.dot(xk, w_ref[...], preferred_element_type=jnp.float32)     # [Bt*L, C] f32
    y_ref[...] = y.astype(y_ref.dtype)                                  # bf16 writeback
    # NOTE: Conv1d bias omitted on purpose — training-mode BatchNorm subtracts
    # the batch mean, so a per-channel constant bias cancels exactly.

    # ---- BatchNorm partial stats over this group (f32, centered) ----------
    # The full circular conv output has L+2 rows per batch with rows L, L+1
    # equal to rows 0, 1; count those two rows twice instead of storing them.
    s = jnp.sum(y, axis=0, keepdims=True)                                # [1, C]
    for b in range(Bt):                                                  # Bt is small & static
        s = s + jnp.sum(y[b * L:b * L + 2, :], axis=0, keepdims=True)
    mean_g = s * (1.0 / float(Bt * (L + 2)))
    d = y - mean_g
    m2 = jnp.sum(d * d, axis=0, keepdims=True)
    for b in range(Bt):
        db = d[b * L:b * L + 2, :]
        m2 = m2 + jnp.sum(db * db, axis=0, keepdims=True)
    sum_ref[...] = s
    m2_ref[...] = m2


# ---------------------------------------------------------------------------
# Pass B: BatchNorm affine (stats folded into scale/shift) + ELU + MaxPool.
# ---------------------------------------------------------------------------
def bn_act_pool_kernel(y_ref, scale_ref, shift_ref, o_ref, a_ref):
    """y_ref:     [L, C]    bf16 conv output for one batch element (rows 0..L-1)
       scale_ref: [1, C]    gamma * rsqrt(var + eps)
       shift_ref: [1, C]    beta - mean * scale
       o_ref:     [Lout, C] pooled output, Lout = L//2 + 1
       a_ref:     [L, C]    f32 scratch holding the activated rows (aligned store;
                            strided f32 reloads feed the pool — no NEG_INF memset).
    """
    L, C = y_ref.shape
    H = L // 2

    a = y_ref[...].astype(jnp.float32) * scale_ref[...] + shift_ref[...]   # BN affine
    a = jnp.where(a > 0, a, jnp.expm1(a))                                   # ELU (alpha=1)
    a_ref[...] = a                                                          # one aligned store

    # MaxPool1d(k=3, s=2, p=1) over the circular conv rows [a_0..a_{L-1}, a_0, a_1]:
    #   pooled[0]          = max(a_0, a_1)
    #   pooled[j], 1<=j<H  = max(a_{2j-1}, a_{2j}, a_{2j+1})
    #   pooled[H]          = max(a_{L-1}, a_0, a_1)
    a_e = a_ref[pl.ds(0, H, stride=2), :]           # rows 0,2,...,L-2
    a_o = a_ref[pl.ds(1, H, stride=2), :]           # rows 1,3,...,L-1
    m01 = jnp.maximum(a_e, a_o)                     # taps 2j, 2j+1
    first = m01[0:1, :]
    body = jnp.maximum(m01[1:, :], a_o[:H - 1, :])  # add tap 2j-1 for j>=1
    last = jnp.maximum(a_o[H - 1:H, :], first)      # wrap tail
    o_ref[...] = jnp.concatenate([first, body, last], axis=0).astype(o_ref.dtype)


# ---------------------------------------------------------------------------
# Wrapper
# ---------------------------------------------------------------------------
def _pick_bt(B, L, C, budget_bytes=40 * 1024 * 1024):
    """Largest batch tile whose per-step VMEM footprint fits the budget
    (sized for v7x's 64 MiB VMEM), preferring an even number of grid steps
    so the two v7x TensorCores get equal work."""
    per = L * C * 48  # rough bytes/batch-elem: double-buffered x (f32) + y (bf16) + temps
    cands = [c for c in (8, 4, 2, 1) if B % c == 0 and c * per <= budget_bytes]
    if not cands:
        return 1
    for c in cands:
        if (B // c) % 2 == 0:
            return c
    return cands[0]


def conv_layer_forward(x, w2d, gamma, beta):
    """x: [B, L, C] channels-last. w2d: [3*C, C] im2col conv weight (tap-major rows).
    gamma/beta: [C] BatchNorm affine params. Returns [B, Lout, C]."""
    B, L, C = x.shape
    assert L % 8 == 0, "sequence length must be a multiple of 8 (sublane tiling)"
    Lout = L // 2 + 1
    Bt = _pick_bt(B, L, C)
    G = B // Bt

    w_bf16 = w2d.astype(jnp.bfloat16)

    params = pltpu.CompilerParams(
        dimension_semantics=("parallel",),
        vmem_limit_bytes=56 * 1024 * 1024,
    )

    # ---- Pass A: circular conv (bf16 MXU) + partial BN stats, grid over batch groups ----
    y2, sums, m2s = pl.pallas_call(
        conv_kernel,
        out_shape=(
            jax.ShapeDtypeStruct((B * L, C), jnp.bfloat16),   # conv output, wrap rows dropped
            jax.ShapeDtypeStruct((G, 1, C), jnp.float32),     # per-group sum
            jax.ShapeDtypeStruct((G, 1, C), jnp.float32),     # per-group centered M2
        ),
        grid_spec=pltpu.PrefetchScalarGridSpec(
            num_scalar_prefetch=0,
            grid=(G,),
            in_specs=[
                pl.BlockSpec((Bt, L, C), lambda g: (g, 0, 0)),
                pl.BlockSpec((3 * C, C), lambda g: (0, 0)),   # constant map: never re-fetched
            ],
            out_specs=(
                pl.BlockSpec((Bt * L, C), lambda g: (g, 0)),
                pl.BlockSpec((None, 1, C), lambda g: (g, 0, 0)),
                pl.BlockSpec((None, 1, C), lambda g: (g, 0, 0)),
            ),
        ),
        compiler_params=params,
    )(x, w_bf16)

    # ---- Combine per-group BN stats (Chan parallel variance, tiny [G, C] glue) ----
    sums = sums.reshape(G, C)
    m2s = m2s.reshape(G, C)
    N = float(B * (L + 2))
    n_g = float(Bt * (L + 2))
    mean = jnp.sum(sums, axis=0) / N
    mean_g = sums / n_g
    m2_total = jnp.sum(m2s, axis=0) + n_g * jnp.sum((mean_g - mean[None, :]) ** 2, axis=0)
    var = m2_total / N
    scale = gamma * lax.rsqrt(var + EPS)
    shift = beta - mean * scale

    # ---- Pass B: normalize + ELU + maxpool, grid over batch ----
    out = pl.pallas_call(
        bn_act_pool_kernel,
        out_shape=jax.ShapeDtypeStruct((B, Lout, C), x.dtype),
        grid_spec=pltpu.PrefetchScalarGridSpec(
            num_scalar_prefetch=0,
            grid=(B,),
            in_specs=[
                pl.BlockSpec((L, C), lambda b: (b, 0)),
                pl.BlockSpec((1, C), lambda b: (0, 0)),
                pl.BlockSpec((1, C), lambda b: (0, 0)),
            ],
            out_specs=pl.BlockSpec((None, Lout, C), lambda b: (b, 0, 0)),
            scratch_shapes=[pltpu.VMEM((L, C), jnp.float32)],
        ),
        compiler_params=params,
    )(y2, scale.reshape(1, C), shift.reshape(1, C))
    return out


# ---------------------------------------------------------------------------
# Pure-JAX reference mirroring the PyTorch module (NCL layout internally)
# ---------------------------------------------------------------------------
def reference(x, W, b_conv, gamma, beta):
    B, L, C = x.shape
    x_ncl = jnp.transpose(x, (0, 2, 1))                               # [B, C, L]
    xp = jnp.concatenate([x_ncl[:, :, L - 2:], x_ncl, x_ncl[:, :, :2]], axis=2)
    y = lax.conv_general_dilated(
        xp, W, window_strides=(1,), padding="VALID",
        dimension_numbers=("NCH", "OIH", "NCH"),
        precision=lax.Precision.HIGHEST)
    y = y + b_conv[None, :, None]
    mean = jnp.mean(y, axis=(0, 2), keepdims=True)
    var = jnp.mean((y - mean) ** 2, axis=(0, 2), keepdims=True)
    y = (y - mean) / jnp.sqrt(var + EPS) * gamma[None, :, None] + beta[None, :, None]
    y = jnp.where(y > 0, y, jnp.expm1(y))
    y = lax.reduce_window(
        y, -jnp.inf, lax.max,
        window_dimensions=(1, 1, 3), window_strides=(1, 1, 2),
        padding=((0, 0), (0, 0), (1, 1)))
    return jnp.transpose(y, (0, 2, 1))                                # [B, Lout, C]


if __name__ == "__main__":
    key = jax.random.PRNGKey(0)
    B, L, C = 4, 32, 128          # C multiple of 128 -> lane-dense stores
    k1, k2, k3, k4, k5 = jax.random.split(key, 5)

    x = jax.random.normal(k1, (B, L, C), jnp.float32)
    # Synthetic params with nn.Conv1d / nn.BatchNorm1d shapes:
    W = (0.5 / (3 * C) ** 0.5) * jax.random.normal(k2, (C, C, 3), jnp.float32)   # [out, in, k]
    b_conv = 0.1 * jax.random.normal(k3, (C,), jnp.float32)                      # conv bias
    gamma = 1.0 + 0.1 * jax.random.normal(k4, (C,), jnp.float32)                 # BN weight
    beta = 0.1 * jax.random.normal(k5, (C,), jnp.float32)                        # BN bias
    # TODO(synk): BatchNorm running-stat updates (running_mean/var side effect)
    # are not modeled; the forward uses batch statistics, matching a fresh module
    # in training mode (this is also what makes dropping the conv bias exact).

    # Re-layout PyTorch's [C_out, C_in, K] weight to the kernel's im2col matrix
    # [3*C_in, C_out] (rows tap-major: k=0 c_in..., k=1 c_in..., k=2 c_in...).
    w2d = jnp.transpose(W, (2, 1, 0)).reshape(3 * C, C)

    out = jax.block_until_ready(conv_layer_forward(x, w2d, gamma, beta))
    ref = reference(x, W, b_conv, gamma, beta)

    assert out.shape == ref.shape, (out.shape, ref.shape)
    err = float(jnp.max(jnp.abs(out - ref)))
    # Tolerance covers bf16 MXU matmul + bf16 intermediate storage rounding
    # against the f32 HIGHEST-precision reference; any indexing / roll /
    # pooling-geometry bug would show up as O(1) differences.
    if err > 8e-2:
        raise RuntimeError(f"Pallas kernel mismatch vs reference: max|diff|={err}")
    print("KERNEL_OK")
</pallas_src>

<mosaic_0001>
module attributes {stable_mosaic.version = 11 : i64} {
  func.func @conv_kernel(%arg0: i32, %arg1: memref<2x32x128xf32, #tpu.memory_space<vmem>>, %arg2: memref<384x128xbf16, #tpu.memory_space<vmem>>, %arg3: memref<64x128xbf16, #tpu.memory_space<vmem>>, %arg4: memref<1x1x128xf32, #tpu.memory_space<vmem>>, %arg5: memref<1x1x128xf32, #tpu.memory_space<vmem>>) attributes {dimension_semantics = [#tpu.dimension_semantics<parallel>], iteration_bounds = array<i64: 2>, scalar_prefetch = 0 : i64, scratch_operands = 0 : i64, tpu.core_type = #tpu.core_type<tc>, window_params = [{transform_indices = @transform_0, window_bounds = array<i64: 2, 32, 128>}, {pipeline_mode = #tpu.pipeline_mode<synchronous>, transform_indices = @transform_1, window_bounds = array<i64: 384, 128>}, {transform_indices = @transform_2, window_bounds = array<i64: 64, 128>}, {transform_indices = @transform_3, window_bounds = array<i64: 1, 1, 128>}, {transform_indices = @transform_4, window_bounds = array<i64: 1, 1, 128>}]} {
    %c0 = arith.constant 0 : index
    %c0_0 = arith.constant 0 : index
    %c0_1 = arith.constant 0 : index
    %0 = vector.load %arg1[%c0, %c0_0, %c0_1] : memref<2x32x128xf32, #tpu.memory_space<vmem>>, vector<2x32x128xf32>
    %1 = vector.extract_strided_slice %0 {offsets = [0, 30, 0], sizes = [2, 2, 128], strides = [1, 1, 1]} : vector<2x32x128xf32> to vector<2x2x128xf32>
    %2 = vector.extract_strided_slice %0 {offsets = [0, 0, 0], sizes = [2, 30, 128], strides = [1, 1, 1]} : vector<2x32x128xf32> to vector<2x30x128xf32>
    %3 = tpu.concatenate %1, %2 in 1 : vector<2x2x128xf32>, vector<2x30x128xf32> -> vector<2x32x128xf32>
    %4 = vector.extract_strided_slice %0 {offsets = [0, 31, 0], sizes = [2, 1, 128], strides = [1, 1, 1]} : vector<2x32x128xf32> to vector<2x1x128xf32>
    %5 = vector.extract_strided_slice %0 {offsets = [0, 0, 0], sizes = [2, 31, 128], strides = [1, 1, 1]} : vector<2x32x128xf32> to vector<2x31x128xf32>
    %6 = tpu.concatenate %4, %5 in 1 : vector<2x1x128xf32>, vector<2x31x128xf32> -> vector<2x32x128xf32>
    %7 = tpu.concatenate %3, %6, %0 in 2 : vector<2x32x128xf32>, vector<2x32x128xf32>, vector<2x32x128xf32> -> vector<2x32x384xf32>
    %8 = vector.shape_cast %7 : vector<2x32x384xf32> to vector<64x384xf32>
    %9 = arith.truncf %8 : vector<64x384xf32> to vector<64x384xbf16>
    %c0_2 = arith.constant 0 : index
    %c0_3 = arith.constant 0 : index
    %10 = vector.load %arg2[%c0_2, %c0_3] : memref<384x128xbf16, #tpu.memory_space<vmem>>, vector<384x128xbf16>
    %cst = arith.constant dense<0.000000e+00> : vector<64x128xf32>
    %11 = tpu.matmul %9, %10, %cst {dimension_numbers = #tpu.dot_dimension_numbers<[1], [0], [0], [1], [0, 0, 1, 1], [], []>} : vector<64x384xbf16>, vector<384x128xbf16>, vector<64x128xf32> -> vector<64x128xf32>
    %12 = arith.truncf %11 : vector<64x128xf32> to vector<64x128xbf16>
    %c0_4 = arith.constant 0 : index
    %c0_5 = arith.constant 0 : index
    %13 = vector.load %arg3[%c0_4, %c0_5] : memref<64x128xbf16, #tpu.memory_space<vmem>>, vector<64x128xbf16>
    tpu.vector_store %arg3[%c0_4, %c0_5], %12 {strides = array<i32>} : memref<64x128xbf16, #tpu.memory_space<vmem>>, vector<64x128xbf16>,
    %cst_6 = arith.constant dense<0.000000e+00> : vector<128xf32>
    %14 = vector.multi_reduction <add>, %11, %cst_6 [0] : vector<64x128xf32> to vector<128xf32>
    %15 = vector.shape_cast %14 : vector<128xf32> to vector<1x128xf32>
    %16 = vector.extract_strided_slice %11 {offsets = [0, 0], sizes = [2, 128], strides = [1, 1]} : vector<64x128xf32> to vector<2x128xf32>
    %cst_7 = arith.constant dense<0.000000e+00> : vector<128xf32>
    %17 = vector.multi_reduction <add>, %16, %cst_7 [0] : vector<2x128xf32> to vector<128xf32>
    %18 = vector.shape_cast %17 : vector<128xf32> to vector<1x128xf32>
    %19 = arith.addf %15, %18 : vector<1x128xf32>
    %20 = vector.extract_strided_slice %11 {offsets = [32, 0], sizes = [2, 128], strides = [1, 1]} : vector<64x128xf32> to vector<2x128xf32>
    %cst_8 = arith.constant dense<0.000000e+00> : vector<128xf32>
    %21 = vector.multi_reduction <add>, %20, %cst_8 [0] : vector<2x128xf32> to vector<128xf32>
    %22 = vector.shape_cast %21 : vector<128xf32> to vector<1x128xf32>
    %23 = arith.addf %19, %22 : vector<1x128xf32>
    %cst_9 = arith.constant 0.0147058824 : f32
    %24 = vector.broadcast %cst_9 : f32 to vector<1x128xf32>
    %25 = arith.mulf %23, %24 : vector<1x128xf32>
    %26 = vector.broadcast %25 : vector<1x128xf32> to vector<64x128xf32>
    %27 = arith.subf %11, %26 : vector<64x128xf32>
    %28 = arith.mulf %27, %27 : vector<64x128xf32>
    %cst_10 = arith.constant dense<0.000000e+00> : vector<128xf32>
    %29 = vector.multi_reduction <add>, %28, %cst_10 [0] : vector<64x128xf32> to vector<128xf32>
    %30 = vector.shape_cast %29 : vector<128xf32> to vector<1x128xf32>
    %31 = vector.extract_strided_slice %27 {offsets = [0, 0], sizes = [2, 128], strides = [1, 1]} : vector<64x128xf32> to vector<2x128xf32>
    %32 = arith.mulf %31, %31 : vector<2x128xf32>
    %cst_11 = arith.constant dense<0.000000e+00> : vector<128xf32>
    %33 = vector.multi_reduction <add>, %32, %cst_11 [0] : vector<2x128xf32> to vector<128xf32>
    %34 = vector.shape_cast %33 : vector<128xf32> to vector<1x128xf32>
    %35 = arith.addf %30, %34 : vector<1x128xf32>
    %36 = vector.extract_strided_slice %27 {offsets = [32, 0], sizes = [2, 128], strides = [1, 1]} : vector<64x128xf32> to vector<2x128xf32>
    %37 = arith.mulf %36, %36 : vector<2x128xf32>
    %cst_12 = arith.constant dense<0.000000e+00> : vector<128xf32>
    %38 = vector.multi_reduction <add>, %37, %cst_12 [0] : vector<2x128xf32> to vector<128xf32>
    %39 = vector.shape_cast %38 : vector<128xf32> to vector<1x128xf32>
    %40 = arith.addf %35, %39 : vector<1x128xf32>
    %c0_13 = arith.constant 0 : index
    %c0_14 = arith.constant 0 : index
    %c0_15 = arith.constant 0 : index
    %41 = vector.load %arg4[%c0_13, %c0_14, %c0_15] : memref<1x1x128xf32, #tpu.memory_space<vmem>>, vector<1x1x128xf32>
    %42 = vector.shape_cast %41 : vector<1x1x128xf32> to vector<1x128xf32>
    %43 = vector.shape_cast %23 : vector<1x128xf32> to vector<1x1x128xf32>
    tpu.vector_store %arg4[%c0_13, %c0_14, %c0_15], %43 {strides = array<i32>} : memref<1x1x128xf32, #tpu.memory_space<vmem>>, vector<1x1x128xf32>,
    %c0_16 = arith.constant 0 : index
    %c0_17 = arith.constant 0 : index
    %c0_18 = arith.constant 0 : index
    %44 = vector.load %arg5[%c0_16, %c0_17, %c0_18] : memref<1x1x128xf32, #tpu.memory_space<vmem>>, vector<1x1x128xf32>
    %45 = vector.shape_cast %44 : vector<1x1x128xf32> to vector<1x128xf32>
    %46 = vector.shape_cast %40 : vector<1x128xf32> to vector<1x1x128xf32>
    tpu.vector_store %arg5[%c0_16, %c0_17, %c0_18], %46 {strides = array<i32>} : memref<1x1x128xf32, #tpu.memory_space<vmem>>, vector<1x1x128xf32>,
    return
  }
  func.func @transform_0(%arg0: i32) -> (i32, i32, i32) {
    %c0_i32 = arith.constant 0 : i32
    %c0_i32_0 = arith.constant 0 : i32
    %c0_i32_1 = arith.constant 0 : i32
    return %arg0, %c0_i32, %c0_i32_0 : i32, i32, i32
  }
  func.func @transform_1(%arg0: i32) -> (i32, i32) {
    %c0_i32 = arith.constant 0 : i32
    %c0_i32_0 = arith.constant 0 : i32
    %c0_i32_1 = arith.constant 0 : i32
    return %c0_i32, %c0_i32_0 : i32, i32
  }
  func.func @transform_2(%arg0: i32) -> (i32, i32) {
    %c0_i32 = arith.constant 0 : i32
    %c0_i32_0 = arith.constant 0 : i32
    return %arg0, %c0_i32 : i32, i32
  }
  func.func @transform_3(%arg0: i32) -> (i32, i32, i32) {
    %c0_i32 = arith.constant 0 : i32
    %c0_i32_0 = arith.constant 0 : i32
    %c0_i32_1 = arith.constant 0 : i32
    return %arg0, %c0_i32, %c0_i32_0 : i32, i32, i32
  }
  func.func @transform_4(%arg0: i32) -> (i32, i32, i32) {
    %c0_i32 = arith.constant 0 : i32
    %c0_i32_0 = arith.constant 0 : i32
    %c0_i32_1 = arith.constant 0 : i32
    return %arg0, %c0_i32, %c0_i32_0 : i32, i32, i32
  }
}

</mosaic_0001>

<llo_original>
// kernel: tpu_custom_call.1
$region0: #{tpu_custom_call.1}
  #allocation0 [shape = 'u32[]', space=smem, size = 0x4, offset = 0x4, fixed_abs, tag = 'smem constant byte address 0x4 - core index']
  #allocation1 [shape = 'u32[144,128]{1,0:T(1,128)}', space=vmem, size = 0x12000, scoped, tag = 'internal scratch']
  %s0 = inlined_call_operand.hbm [shape: f32[4,32,128], index: 0, kind: input, shape index: {}]
  %s1 = inlined_call_operand.hbm [shape: bf16[384,128], index: 1, kind: input, shape index: {}]
  %s2 = inlined_call_operand.hbm [shape: bf16[128,128], index: 2, kind: output, shape index: {0}]
  %s3 = inlined_call_operand.hbm [shape: f32[2,1,128], index: 3, kind: output, shape index: {1}]
  %s4 = inlined_call_operand.hbm [shape: f32[2,1,128], index: 4, kind: output, shape index: {2}]
  %5 = xla_tuple %s2, %s3, %s4
  %s6 = sld [smem:[#allocation0]]
  $region65: #{tpu_custom_call.1} parent=0
    _
  %s8 = ssub.s32 1, %s6
  %s9 = scalar_select 0, %s8, %s6
  $region1: #{tpu_custom_call.1} parent=0
    #allocation2 [shape = 'u8[65536]{0}', space=vmem, size = 0x10000, scoped, tag = 'input window, operand 0']
    #allocation3 [shape = 's32[2]{0}', space=sflag, size = 0x8, scoped, tag = 'scoped memory for tpu_custom_call.1']
    #allocation4 [shape = 's32[2]{0}', space=sflag, size = 0x8, scoped, tag = 'scoped memory for tpu_custom_call.1']
    #allocation5 [shape = 'u8[98304]{0}', space=vmem, size = 0x18000, scoped, tag = 'input window, operand 1, single buffered']
    #allocation6 [shape = 's32[1]{0}', space=sflag, size = 0x4, scoped, tag = 'scoped memory for tpu_custom_call.1']
    #allocation7 [shape = 'u8[32768]{0}', space=vmem, size = 0x8000, scoped, tag = 'output window, operand 0']
    #allocation8 [shape = 'u8[1024]{0}', space=vmem, size = 0x400, scoped, tag = 'output window, operand 1']
    #allocation9 [shape = 's32[2]{0}', space=sflag, size = 0x8, scoped, tag = 'scoped memory for tpu_custom_call.1']
    #allocation10 [shape = 'u8[1024]{0}', space=vmem, size = 0x400, scoped, tag = 'output window, operand 2']
    %10 = vsyncpa [#allocation3], 0
    %s11 = scalar_lea.sflag [#allocation3], 1
    %12 = vsyncpa %s11, 0
    %13 = vsyncpa [#allocation6], 0
    %14 = vsyncpa [#allocation4], 0
    %s15 = scalar_lea.sflag [#allocation4], 1
    %16 = vsyncpa %s15, 0
    %17 = vsyncpa [#allocation9], 0
    %s18 = scalar_lea.sflag [#allocation9], 1
    %19 = vsyncpa %s18, 0
    loop: start=0, step=1, limit=4
    $region2: #{tpu_custom_call.1} parent=1 // loop_pre_header
      _
    $region3: #{tpu_custom_call.1} parent=1 // loop_header
      %s21 = sphi 0, %s25
      %p22 = scmp.ge.s32.totalorder %s21, 4
      %s31 = sphi 0, %s33
      %s34 = sphi 0, %s31
      %s35 = sphi 0, %s34
      %s51 = sphi 0, %s35
      %s55 = sphi 0, %s55
      %s57 = sphi 0, %s55
      %s58 = sphi 0, %s57
      %s72 = sphi 0, %s58
      %s78 = sphi 0, %s80
      %s81 = sphi 0, %s78
      %s82 = sphi 0, %s81
      %s98 = sphi 0, %s82
      %s104 = sphi 0, %s106
      %s107 = sphi 0, %s104
      %s108 = sphi 0, %s107
      %s124 = sphi 0, %s108
      %s130 = sphi 0, %s132
      %s133 = sphi 0, %s130
      %s134 = sphi 0, %s133
      %s150 = sphi 0, %s134
    $region4: #{tpu_custom_call.1} parent=1 // loop_header_branch
      %24 = sbr.rel (%p22) target = $region8
    $region5: #{tpu_custom_call.1} parent=1 // loop_body
      %s26 = ssub.s32 %s21, 1
      %s27 = ssub.s32 %s21, 2
      %s28 = sadd.s32 %s21, 1
      %s29 = ssub.s32 %s21, %s28
      %p30 = scmp.eq.s32.totalorder %s29, 0
      %s32 = sadd.s32 %s31, 1
      %s33 = scalar_select %p30, %s31, %s32
      %p36 = pneg %p30
      %p37 = scmp.eq.s32.totalorder %s21, 1
      %p38 = por %p36, %p37
      %p39 = scmp.ne.s32.totalorder %s31, %s34
      %p40 = scmp.eq.s32.totalorder %s21, 0
      %p41 = por %p39, %p40
      %p42 = scmp.ne.s32.totalorder %s31, %s34
      %p43 = scmp.eq.s32.totalorder %s26, 1
      %p44 = por %p42, %p43
      %p45 = scmp.ne.s32.totalorder %s34, %s35
      %p46 = scmp.eq.s32.totalorder %s26, 0
      %p47 = por %p45, %p46
      %p48 = scmp.ne.s32.totalorder %s34, %s35
      %p49 = scmp.eq.s32.totalorder %s27, 1
      %p50 = por %p48, %p49
      %p52 = scmp.ne.s32.totalorder %s35, %s51
      %p53 = scmp.eq.s32.totalorder %s27, 0
      %p54 = por %p52, %p53
      %s56 = sadd.s32 %s55, 1
      %p59 = scmp.eq.s32.totalorder %s21, 1
      %p60 = scmp.ne.s32.totalorder %s55, %s57
      %p61 = scmp.eq.s32.totalorder %s21, 0
      %p62 = por %p60, %p61
      %p63 = scmp.ne.s32.totalorder %s55, %s57
      %p64 = scmp.eq.s32.totalorder %s26, 1
      %p65 = por %p63, %p64
      %p66 = scmp.ne.s32.totalorder %s57, %s58
      %p67 = scmp.eq.s32.totalorder %s26, 0
      %p68 = por %p66, %p67
      %p69 = scmp.ne.s32.totalorder %s57, %s58
      %p70 = scmp.eq.s32.totalorder %s27, 1
      %p71 = por %p69, %p70
      %p73 = scmp.ne.s32.totalorder %s58, %s72
      %p74 = scmp.eq.s32.totalorder %s27, 0
      %p75 = por %p73, %p74
      %s76 = ssub.s32 %s21, %s28
      %p77 = scmp.eq.s32.totalorder %s76, 0
      %s79 = sadd.s32 %s78, 1
      %s80 = scalar_select %p77, %s78, %s79
      %p83 = pneg %p77
      %p84 = scmp.eq.s32.totalorder %s21, 1
      %p85 = por %p83, %p84
      %p86 = scmp.ne.s32.totalorder %s78, %s81
      %p87 = scmp.eq.s32.totalorder %s21, 0
      %p88 = por %p86, %p87
      %p89 = scmp.ne.s32.totalorder %s78, %s81
      %p90 = scmp.eq.s32.totalorder %s26, 1
      %p91 = por %p89, %p90
      %p92 = scmp.ne.s32.totalorder %s81, %s82
      %p93 = scmp.eq.s32.totalorder %s26, 0
      %p94 = por %p92, %p93
      %p95 = scmp.ne.s32.totalorder %s81, %s82
      %p96 = scmp.eq.s32.totalorder %s27, 1
      %p97 = por %p95, %p96
      %p99 = scmp.ne.s32.totalorder %s82, %s98
      %p100 = scmp.eq.s32.totalorder %s27, 0
      %p101 = por %p99, %p100
      %s102 = ssub.s32 %s21, %s28
      %p103 = scmp.eq.s32.totalorder %s102, 0
      %s105 = sadd.s32 %s104, 1
      %s106 = scalar_select %p103, %s104, %s105
      %p109 = pneg %p103
      %p110 = scmp.eq.s32.totalorder %s21, 1
      %p111 = por %p109, %p110
      %p112 = scmp.ne.s32.totalorder %s104, %s107
      %p113 = scmp.eq.s32.totalorder %s21, 0
      %p114 = por %p112, %p113
      %p115 = scmp.ne.s32.totalorder %s104, %s107
      %p116 = scmp.eq.s32.totalorder %s26, 1
      %p117 = por %p115, %p116
      %p118 = scmp.ne.s32.totalorder %s107, %s108
      %p119 = scmp.eq.s32.totalorder %s26, 0
      %p120 = por %p118, %p119
      %p121 = scmp.ne.s32.totalorder %s107, %s108
      %p122 = scmp.eq.s32.totalorder %s27, 1
      %p123 = por %p121, %p122
      %p125 = scmp.ne.s32.totalorder %s108, %s124
      %p126 = scmp.eq.s32.totalorder %s27, 0
      %p127 = por %p125, %p126
      %s128 = ssub.s32 %s21, %s28
      %p129 = scmp.eq.s32.totalorder %s128, 0
      %s131 = sadd.s32 %s130, 1
      %s132 = scalar_select %p129, %s130, %s131
      %p135 = pneg %p129
      %p136 = scmp.eq.s32.totalorder %s21, 1
      %p137 = por %p135, %p136
      %p138 = scmp.ne.s32.totalorder %s130, %s133
      %p139 = scmp.eq.s32.totalorder %s21, 0
      %p140 = por %p138, %p139
      %p141 = scmp.ne.s32.totalorder %s130, %s133
      %p142 = scmp.eq.s32.totalorder %s26, 1
      %p143 = por %p141, %p142
      %p144 = scmp.ne.s32.totalorder %s133, %s134
      %p145 = scmp.eq.s32.totalorder %s26, 0
      %p146 = por %p144, %p145
      %p147 = scmp.ne.s32.totalorder %s133, %s134
      %p148 = scmp.eq.s32.totalorder %s27, 1
      %p149 = por %p147, %p148
      %p151 = scmp.ne.s32.totalorder %s134, %s150
      %p152 = scmp.eq.s32.totalorder %s27, 0
      %p153 = por %p151, %p152
      %p154 = scmp.le.s32.totalorder 1, %s21
      %p155 = scmp.lt.s32.totalorder %s21, 3
      %p156 = pnand %p154, %p155
      %p157 = pneg %p156
      // Predicated region
      $region9: #{tpu_custom_call.1} parent=5 // pred_check
        _
      $region10: #{tpu_custom_call.1} parent=5 // pred_check_branch
        %159 = sbr.rel (%p156) target = $region12
      $region11: #{tpu_custom_call.1} parent=5 // pred_region
        %s160 = ssub.s32 %s21, 1
        // Predicated region
        $region13: #{tpu_custom_call.1} parent=11 // pred_check
          %p161 = pneg %p68
        $region14: #{tpu_custom_call.1} parent=11 // pred_check_branch
          %163 = sbr.rel (%p161) target = $region16
        $region15: #{tpu_custom_call.1} parent=11 // pred_region
          %s165 = ssub.s32 3072, 3072
          %166 = vsyncadd [#allocation6], %s165
          %s167 = sshll.u32 [#allocation5], 4
          %s168 = int_to_ptr.vmem [resolvable:$true] %s167
          %173 = dma.hbm_to_vmem [thread:$0]  %s1, 3072, %s168, [#allocation6], 64, 64, 4
        $region16: #{tpu_custom_call.1} parent=11 // pred_fallthru
          _
      $region12: #{tpu_custom_call.1} parent=5 // pred_fallthru
        _
      %p174 = scmp.lt.s32.totalorder %s21, 2
      // Predicated region
      $region17: #{tpu_custom_call.1} parent=5 // pred_check
        %p175 = pneg %p174
      $region18: #{tpu_custom_call.1} parent=5 // pred_check_branch
        %177 = sbr.rel (%p175) target = $region20
      $region19: #{tpu_custom_call.1} parent=5 // pred_region
        // Predicated region
        $region21: #{tpu_custom_call.1} parent=19 // pred_check
          %p178 = pneg %p41
        $region22: #{tpu_custom_call.1} parent=19 // pred_check_branch
          %180 = sbr.rel (%p178) target = $region24
        $region23: #{tpu_custom_call.1} parent=19 // pred_region
          %s181 = sand.u32 %s31, 1
          %s182 = scalar_lea.sflag [#allocation3], %s181
          %s183 = sand.u32 %s31, 1
          %s184 = smul.addr %s183, 64
          %s185 = scalar_lea.vmem [#allocation2], %s184
          %s186 = smul.u32 2, %s21
          %s188 = ssub.s32 1024, 1024
          %189 = vsyncadd %s182, %s188
          %s190 = smul.addr %s186, 4
          %s191 = smul.addr %s190, 128
          %s192 = scalar_lea.hbm %s0, %s191
          %s193 = sshll.u32 %s185, 4
          %s194 = int_to_ptr.vmem [resolvable:$true] %s193
          %199 = dma.hbm_to_vmem [thread:$0]  %s192, 1024, %s194, %s182, 128, 128, 8
        $region24: #{tpu_custom_call.1} parent=19 // pred_fallthru
          _
      $region20: #{tpu_custom_call.1} parent=5 // pred_fallthru
        _
      %p200 = scmp.le.s32.totalorder 1, %s21
      %p201 = scmp.lt.s32.totalorder %s21, 3
      %p202 = pnand %p200, %p201
      %p203 = pneg %p202
      // Predicated region
      $region25: #{tpu_custom_call.1} parent=5 // pred_check
        _
      $region26: #{tpu_custom_call.1} parent=5 // pred_check_branch
        %205 = sbr.rel (%p202) target = $region28
      $region27: #{tpu_custom_call.1} parent=5 // pred_region
        %s206 = ssub.s32 %s21, 1
        %s207 = sand.u32 %s34, 1
        %s208 = scalar_lea.sflag [#allocation3], %s207
        %s209 = sand.u32 %s34, 1
        %s210 = smul.addr %s209, 64
        %s211 = scalar_lea.vmem [#allocation2], %s210
        // Predicated region
        $region29: #{tpu_custom_call.1} parent=27 // pred_check
          %p212 = pneg %p47
        $region30: #{tpu_custom_call.1} parent=27 // pred_check_branch
          %214 = sbr.rel (%p212) target = $region32
        $region31: #{tpu_custom_call.1} parent=27 // pred_region
          %215 = dma.done %s208, 1024
        $region32: #{tpu_custom_call.1} parent=27 // pred_fallthru
          _
        // Predicated region
        $region33: #{tpu_custom_call.1} parent=27 // pred_check
          %p216 = pneg %p68
        $region34: #{tpu_custom_call.1} parent=27 // pred_check_branch
          %218 = sbr.rel (%p216) target = $region36
        $region35: #{tpu_custom_call.1} parent=27 // pred_region
          %219 = dma.done [#allocation6], 3072
        $region36: #{tpu_custom_call.1} parent=27 // pred_fallthru
          _
        %s220 = sand.u32 %s34, 1
        %s221 = scalar_lea.sflag [#allocation3], %s220
        %s222 = sand.u32 %s34, 1
        %s223 = smul.addr %s222, 64
        %s224 = scalar_lea.vmem [#allocation2], %s223
        %p225 = pneg %p47
        %p226 = pneg %p44
        %p227 = pneg %p68
        %p228 = pneg %p65
        %p229 = pneg %p94
        %p230 = pneg %p91
        %s231 = sand.u32 %s81, 1
        %s232 = scalar_lea.sflag [#allocation4], %s231
        %s233 = sand.u32 %s81, 1
        %s234 = smul.addr %s233, 32
        %s235 = scalar_lea.vmem [#allocation7], %s234
        %p236 = pneg %p120
        %p237 = pneg %p117
        %s238 = sand.u32 %s26, 1
        %s239 = scalar_lea.sflag [#allocation9], %s238
        %s240 = sand.u32 %s107, 1
        %s241 = scalar_lea.vmem [#allocation8], %s240
        %p242 = pneg %p146
        %p243 = pneg %p143
        %s244 = sand.u32 %s26, 1
        %s245 = scalar_lea.sflag [#allocation9], %s244
        %s246 = sand.u32 %s133, 1
        %s247 = scalar_lea.vmem [#allocation10], %s246
        %s248 = smul.u32 2, %s26
        %s249 = smul.u32 8, %s26
        %v251 = vld [vmem:[%s211] sm:$0xff]
        %v252 = vld [vmem:[%s211 + $0x8] sm:$0xff]
        %v253 = vld [vmem:[%s211 + $0x10] sm:$0xff]
        %v254 = vld [vmem:[%s211 + $0x18] sm:$0xff]
        %v255 = vld [vmem:[%s211 + $0x20] sm:$0xff]
        %v256 = vld [vmem:[%s211 + $0x28] sm:$0xff]
        %v257 = vld [vmem:[%s211 + $0x30] sm:$0xff]
        %v258 = vld [vmem:[%s211 + $0x38] sm:$0xff]
        %v261 = vrot.slane %v254, 6
        %v262 = vrot.slane %v258, 6
        %vm271 = vcmask 1041408
        %v272 = vrot.slane %v251, 6
        %v273 = vrot.slane %v252, 6
        %v274 = vsel %vm271, %v272, %v273
        %v275 = vrot.slane %v253, 6
        %v276 = vsel %vm271, %v273, %v275
        %v277 = vsel %vm271, %v275, %v261
        %v278 = vrot.slane %v255, 6
        %v279 = vrot.slane %v256, 6
        %v280 = vsel %vm271, %v278, %v279
        %v281 = vrot.slane %v257, 6
        %v282 = vsel %vm271, %v279, %v281
        %v283 = vsel %vm271, %v281, %v262
        %v292 = vsel %vm271, %v261, %v272
        %v293 = vsel %vm271, %v262, %v278
        %v294 = vrot.slane %v254, 7
        %v295 = vrot.slane %v258, 7
        %vm298 = vcmask 1040384
        %v299 = vrot.slane %v251, 7
        %v300 = vrot.slane %v252, 7
        %v301 = vsel %vm298, %v299, %v300
        %v302 = vrot.slane %v253, 7
        %v303 = vsel %vm298, %v300, %v302
        %v304 = vsel %vm298, %v302, %v294
        %v305 = vrot.slane %v255, 7
        %v306 = vrot.slane %v256, 7
        %v307 = vsel %vm298, %v305, %v306
        %v308 = vrot.slane %v257, 7
        %v309 = vsel %vm298, %v306, %v308
        %v310 = vsel %vm298, %v308, %v295
        %v319 = vsel %vm298, %v294, %v299
        %v320 = vsel %vm298, %v295, %v305
        %v321 = vpack.c.bf16 %v274, %v292
        %v322 = vpack.c.bf16 %v301, %v319
        %v323 = vpack.c.bf16 %v252, %v251
        %v324 = vpack.c.bf16 %v277, %v276
        %v325 = vpack.c.bf16 %v304, %v303
        %v326 = vpack.c.bf16 %v254, %v253
        %v327 = vpack.c.bf16 %v280, %v293
        %v328 = vpack.c.bf16 %v307, %v320
        %v329 = vpack.c.bf16 %v256, %v255
        %v330 = vpack.c.bf16 %v283, %v282
        %v331 = vpack.c.bf16 %v310, %v309
        %v332 = vpack.c.bf16 %v258, %v257
        %v333 = vld [vmem:[#allocation5] sm:$0xf]
        %v334 = vld [vmem:[#allocation5 + $0x4] sm:$0xf]
        %v335 = vld [vmem:[#allocation5 + $0x8] sm:$0xf]
        %v336 = vld [vmem:[#allocation5 + $0xc] sm:$0xf]
        %v337 = vld [vmem:[#allocation5 + $0x10] sm:$0xf]
        %v338 = vld [vmem:[#allocation5 + $0x14] sm:$0xf]
        %v339 = vld [vmem:[#allocation5 + $0x18] sm:$0xf]
        %v340 = vld [vmem:[#allocation5 + $0x1c] sm:$0xf]
        %v341 = vld [vmem:[#allocation5 + $0x20] sm:$0xf]
        %v342 = vld [vmem:[#allocation5 + $0x24] sm:$0xf]
        %v343 = vld [vmem:[#allocation5 + $0x28] sm:$0xf]
        %v344 = vld [vmem:[#allocation5 + $0x2c] sm:$0xf]
        %v345 = vld [vmem:[#allocation5 + $0x30] sm:$0xf]
        %v346 = vld [vmem:[#allocation5 + $0x34] sm:$0xf]
        %v347 = vld [vmem:[#allocation5 + $0x38] sm:$0xf]
        %v348 = vld [vmem:[#allocation5 + $0x3c] sm:$0xf]
        %v349 = vld [vmem:[#allocation5 + $0x40] sm:$0xf]
        %v350 = vld [vmem:[#allocation5 + $0x44] sm:$0xf]
        %v351 = vld [vmem:[#allocation5 + $0x48] sm:$0xf]
        %v352 = vld [vmem:[#allocation5 + $0x4c] sm:$0xf]
        %v353 = vld [vmem:[#allocation5 + $0x50] sm:$0xf]
        %v354 = vld [vmem:[#allocation5 + $0x54] sm:$0xf]
        %v355 = vld [vmem:[#allocation5 + $0x58] sm:$0xf]
        %v356 = vld [vmem:[#allocation5 + $0x5c] sm:$0xf]
        %v357 = vld [vmem:[#allocation5 + $0x60] sm:$0xf]
        %v358 = vld [vmem:[#allocation5 + $0x64] sm:$0xf]
        %v359 = vld [vmem:[#allocation5 + $0x68] sm:$0xf]
        %v360 = vld [vmem:[#allocation5 + $0x6c] sm:$0xf]
        %v361 = vld [vmem:[#allocation5 + $0x70] sm:$0xf]
        %v362 = vld [vmem:[#allocation5 + $0x74] sm:$0xf]
        %v363 = vld [vmem:[#allocation5 + $0x78] sm:$0xf]
        %v364 = vld [vmem:[#allocation5 + $0x7c] sm:$0xf]
        %v365 = vld [vmem:[#allocation5 + $0x80] sm:$0xf]
        %v366 = vld [vmem:[#allocation5 + $0x84] sm:$0xf]
        %v367 = vld [vmem:[#allocation5 + $0x88] sm:$0xf]
        %v368 = vld [vmem:[#allocation5 + $0x8c] sm:$0xf]
        %v369 = vld [vmem:[#allocation5 + $0x90] sm:$0xf]
        %v370 = vld [vmem:[#allocation5 + $0x94] sm:$0xf]
        %v371 = vld [vmem:[#allocation5 + $0x98] sm:$0xf]
        %v372 = vld [vmem:[#allocation5 + $0x9c] sm:$0xf]
        %v373 = vld [vmem:[#allocation5 + $0xa0] sm:$0xf]
        %v374 = vld [vmem:[#allocation5 + $0xa4] sm:$0xf]
        %v375 = vld [vmem:[#allocation5 + $0xa8] sm:$0xf]
        %v376 = vld [vmem:[#allocation5 + $0xac] sm:$0xf]
        %v377 = vld [vmem:[#allocation5 + $0xb0] sm:$0xf]
        %v378 = vld [vmem:[#allocation5 + $0xb4] sm:$0xf]
        %v379 = vld [vmem:[#allocation5 + $0xb8] sm:$0xf]
        %v380 = vld [vmem:[#allocation5 + $0xbc] sm:$0xf]
        %v429 = vunpack.c.l.b16 %v333
        %v430 = vunpack.c.l.b16 %v334
        %v431 = vunpack.c.l.b16 %v335
        %v432 = vunpack.c.l.b16 %v336
        %v433 = vunpack.c.l.b16 %v337
        %v434 = vunpack.c.l.b16 %v338
        %v435 = vunpack.c.l.b16 %v339
        %v436 = vunpack.c.l.b16 %v340
        %v437 = vunpack.c.l.b16 %v341
        %v438 = vunpack.c.l.b16 %v342
        %v439 = vunpack.c.l.b16 %v343
        %v440 = vunpack.c.l.b16 %v344
        %v441 = vunpack.c.l.b16 %v345
        %v442 = vunpack.c.l.b16 %v346
        %v443 = vunpack.c.l.b16 %v347
        %v444 = vunpack.c.l.b16 %v348
        %v445 = vunpack.c.l.b16 %v349
        %v446 = vunpack.c.l.b16 %v350
        %v447 = vunpack.c.l.b16 %v351
        %v448 = vunpack.c.l.b16 %v352
        %v449 = vunpack.c.l.b16 %v353
        %v450 = vunpack.c.l.b16 %v354
        %v451 = vunpack.c.l.b16 %v355
        %v452 = vunpack.c.l.b16 %v356
        %v453 = vunpack.c.l.b16 %v357
        %v454 = vunpack.c.l.b16 %v358
        %v455 = vunpack.c.l.b16 %v359
        %v456 = vunpack.c.l.b16 %v360
        %v457 = vunpack.c.l.b16 %v361
        %v458 = vunpack.c.l.b16 %v362
        %v459 = vunpack.c.l.b16 %v363
        %v460 = vunpack.c.l.b16 %v364
        %v461 = vunpack.c.l.b16 %v365
        %v462 = vunpack.c.l.b16 %v366
        %v463 = vunpack.c.l.b16 %v367
        %v464 = vunpack.c.l.b16 %v368
        %v465 = vunpack.c.l.b16 %v369
        %v466 = vunpack.c.l.b16 %v370
        %v467 = vunpack.c.l.b16 %v371
        %v468 = vunpack.c.l.b16 %v372
        %v469 = vunpack.c.l.b16 %v373
        %v470 = vunpack.c.l.b16 %v374
        %v471 = vunpack.c.l.b16 %v375
        %v472 = vunpack.c.l.b16 %v376
        %v473 = vunpack.c.l.b16 %v377
        %v474 = vunpack.c.l.b16 %v378
        %v475 = vunpack.c.l.b16 %v379
        %v476 = vunpack.c.l.b16 %v380
        %v477 = vpack.c.b16 %v430, %v429
        %v478 = vpack.c.b16 %v432, %v431
        %v479 = vpack.c.b16 %v434, %v433
        %v480 = vpack.c.b16 %v436, %v435
        %v481 = vpack.c.b16 %v438, %v437
        %v482 = vpack.c.b16 %v440, %v439
        %v483 = vpack.c.b16 %v442, %v441
        %v484 = vpack.c.b16 %v444, %v443
        %v485 = vpack.c.b16 %v446, %v445
        %v486 = vpack.c.b16 %v448, %v447
        %v487 = vpack.c.b16 %v450, %v449
        %v488 = vpack.c.b16 %v452, %v451
        %v489 = vpack.c.b16 %v454, %v453
        %v490 = vpack.c.b16 %v456, %v455
        %v491 = vpack.c.b16 %v458, %v457
        %v492 = vpack.c.b16 %v460, %v459
        %v493 = vpack.c.b16 %v462, %v461
        %v494 = vpack.c.b16 %v464, %v463
        %v495 = vpack.c.b16 %v466, %v465
        %v496 = vpack.c.b16 %v468, %v467
        %v497 = vpack.c.b16 %v470, %v469
        %v498 = vpack.c.b16 %v472, %v471
        %v499 = vpack.c.b16 %v474, %v473
        %v500 = vpack.c.b16 %v476, %v475
        %525 = vmatprep.subr.bf16.mxu0 0
        %526 = vmatpush1.bf16.msra.mxu0 %v477
        %527 = vmatprep.subr.bf16.mxu0 0
        %528 = vmatpush1.bf16.msra.mxu0 %v478
        %529 = vmatprep.subr.bf16.mxu0 0
        %530 = vmatpush1.bf16.msra.mxu0 %v479
        %531 = vmatprep.subr.bf16.mxu0 0
        %532 = vmatpush1.bf16.msra.mxu0 %v480
        %533 = vmatprep.subr.bf16.mxu0 0
        %534 = vmatpush1.bf16.msra.mxu0 %v481
        %535 = vmatprep.subr.bf16.mxu0 0
        %536 = vmatpush1.bf16.msra.mxu0 %v482
        %537 = vmatprep.subr.bf16.mxu0 0
        %538 = vmatpush1.bf16.msra.mxu0 %v483
        %539 = vmatprep.subr.bf16.mxu0 0
        %540 = vmatpush1.bf16.msra.mxu0 %v484
        %541 = vmatprep.subr.bf16.mxu0 0
        %542 = vmatpush1.bf16.msra.mxu0 %v485
        %543 = vmatprep.subr.bf16.mxu0 0
        %544 = vmatpush1.bf16.msra.mxu0 %v486
        %545 = vmatprep.subr.bf16.mxu0 0
        %546 = vmatpush1.bf16.msra.mxu0 %v487
        %547 = vmatprep.subr.bf16.mxu0 0
        %548 = vmatpush1.bf16.msra.mxu0 %v488
        %549 = vmatprep.subr.bf16.mxu0 0
        %550 = vmatpush1.bf16.msra.mxu0 %v489
        %551 = vmatprep.subr.bf16.mxu0 0
        %552 = vmatpush1.bf16.msra.mxu0 %v490
        %553 = vmatprep.subr.bf16.mxu0 0
        %554 = vmatpush1.bf16.msra.mxu0 %v491
        %555 = vmatprep.subr.bf16.mxu0 0
        %556 = vmatpush1.bf16.msra.mxu0 %v492
        %557 = vmatprep.mubr.bf16.mxu0 %v322
        %558 = vmatmul.mubr.bf16.gmra.mrb[0].mxu0 %v321
        %v559 = vpop.f32.mrb[0].mxu0
        %v560 = vadd.f32 0.0, %v559
        %v561 = vpop.f32.mrb[0].mxu0
        %v562 = vpop.f32.mrb[0].mxu0
        %v563 = vadd.f32 0.0, %v562
        %v564 = vpop.f32.mrb[0].mxu0
        %565 = vmatprep.mubr.bf16.mxu0 %v325
        %566 = vmatmul.mubr.bf16.gmra.mrb[0].mxu0 %v324
        %v567 = vpop.f32.mrb[0].mxu0
        %v568 = vadd.f32 0.0, %v567
        %v569 = vpop.f32.mrb[0].mxu0
        %v570 = vpop.f32.mrb[0].mxu0
        %v571 = vadd.f32 0.0, %v570
        %v572 = vpop.f32.mrb[0].mxu0
        %573 = vmatprep.mubr.bf16.mxu0 %v328
        %574 = vmatmul.mubr.bf16.gmra.mrb[0].mxu0 %v327
        %v575 = vpop.f32.mrb[0].mxu0
        %v576 = vadd.f32 0.0, %v575
        %v577 = vpop.f32.mrb[0].mxu0
        %v578 = vpop.f32.mrb[0].mxu0
        %v579 = vadd.f32 0.0, %v578
        %v580 = vpop.f32.mrb[0].mxu0
        %581 = vmatprep.mubr.bf16.mxu0 %v331
        %582 = vmatmul.mubr.bf16.gmra.mrb[0].mxu0 %v330
        %v583 = vpop.f32.mrb[0].mxu0
        %v584 = vadd.f32 0.0, %v583
        %v585 = vpop.f32.mrb[0].mxu0
        %v586 = vpop.f32.mrb[0].mxu0
        %v587 = vadd.f32 0.0, %v586
        %v588 = vpop.f32.mrb[0].mxu0
        %589 = vdwg.mxu0
        %590 = vmatprep.subr.bf16.mxu0 0
        %591 = vmatpush1.bf16.msra.mxu0 %v493
        %592 = vmatprep.subr.bf16.mxu0 0
        %593 = vmatpush1.bf16.msra.mxu0 %v494
        %594 = vmatprep.subr.bf16.mxu0 0
        %595 = vmatpush1.bf16.msra.mxu0 %v495
        %596 = vmatprep.subr.bf16.mxu0 0
        %597 = vmatpush1.bf16.msra.mxu0 %v496
        %598 = vmatprep.subr.bf16.mxu0 0
        %599 = vmatpush1.bf16.msra.mxu0 %v497
        %600 = vmatprep.subr.bf16.mxu0 0
        %601 = vmatpush1.bf16.msra.mxu0 %v498
        %602 = vmatprep.subr.bf16.mxu0 0
        %603 = vmatpush1.bf16.msra.mxu0 %v499
        %604 = vmatprep.subr.bf16.mxu0 0
        %605 = vmatpush1.bf16.msra.mxu0 %v500
        %606 = vmatprep.subr.bf16.mxu0 0
        %607 = vmatpush1.bf16.msra.mxu0 0
        %608 = vmatprep.subr.bf16.mxu0 0
        %609 = vmatpush1.bf16.msra.mxu0 0
        %610 = vmatprep.subr.bf16.mxu0 0
        %611 = vmatpush1.bf16.msra.mxu0 0
        %612 = vmatprep.subr.bf16.mxu0 0
        %613 = vmatpush1.bf16.msra.mxu0 0
        %614 = vmatprep.subr.bf16.mxu0 0
        %615 = vmatpush1.bf16.msra.mxu0 0
        %616 = vmatprep.subr.bf16.mxu0 0
        %617 = vmatpush1.bf16.msra.mxu0 0
        %618 = vmatprep.subr.bf16.mxu0 0
        %619 = vmatpush1.bf16.msra.mxu0 0
        %620 = vmatprep.subr.bf16.mxu0 0
        %621 = vmatpush1.bf16.msra.mxu0 0
        %622 = vmatprep.mubr.bf16.mxu0 0
        %623 = vmatmul.mubr.bf16.gmra.mrb[0].mxu0 %v323
        %v624 = vpop.f32.mrb[0].mxu0
        %v625 = vadd.f32 %v560, %v624
        %v626 = vpop.f32.mrb[0].mxu0
        %v627 = vpop.f32.mrb[0].mxu0
        %v628 = vadd.f32 %v563, %v627
        %v629 = vpop.f32.mrb[0].mxu0
        %630 = vmatprep.mubr.bf16.mxu0 0
        %631 = vmatmul.mubr.bf16.gmra.mrb[0].mxu0 %v326
        %v632 = vpop.f32.mrb[0].mxu0
        %v633 = vadd.f32 %v568, %v632
        %v634 = vpop.f32.mrb[0].mxu0
        %v635 = vpop.f32.mrb[0].mxu0
        %v636 = vadd.f32 %v571, %v635
        %v637 = vpop.f32.mrb[0].mxu0
        %638 = vmatprep.mubr.bf16.mxu0 0
        %639 = vmatmul.mubr.bf16.gmra.mrb[0].mxu0 %v329
        %v640 = vpop.f32.mrb[0].mxu0
        %v641 = vadd.f32 %v576, %v640
        %v642 = vpop.f32.mrb[0].mxu0
        %v643 = vpop.f32.mrb[0].mxu0
        %v644 = vadd.f32 %v579, %v643
        %v645 = vpop.f32.mrb[0].mxu0
        %646 = vmatprep.mubr.bf16.mxu0 0
        %647 = vmatmul.mubr.bf16.gmra.mrb[0].mxu0 %v332
        %v648 = vpop.f32.mrb[0].mxu0
        %v649 = vadd.f32 %v584, %v648
        %v650 = vpop.f32.mrb[0].mxu0
        %v651 = vpop.f32.mrb[0].mxu0
        %v652 = vadd.f32 %v587, %v651
        %v653 = vpop.f32.mrb[0].mxu0
        %654 = vdwg.mxu0
        %v655 = vpack.c.bf16 %v628, %v625
        %v656 = vpack.c.bf16 %v636, %v633
        %v657 = vpack.c.bf16 %v644, %v641
        %v658 = vpack.c.bf16 %v652, %v649
        %v663 = vunpack.c.l.b16 %v655
        %v664 = vunpack.c.h.b16 %v655
        %v665 = vunpack.c.l.b16 %v656
        %v666 = vunpack.c.h.b16 %v656
        %v667 = vunpack.c.l.b16 %v657
        %v668 = vunpack.c.h.b16 %v657
        %v669 = vunpack.c.l.b16 %v658
        %v670 = vunpack.c.h.b16 %v658
        %v671 = vpack.c.b16 %v663, %v663
        %v672 = vpack.c.b16 %v664, %v664
        %v673 = vpack.c.b16 %v665, %v665
        %v674 = vpack.c.b16 %v666, %v666
        %v675 = vpack.c.b16 %v667, %v667
        %v676 = vpack.c.b16 %v668, %v668
        %v677 = vpack.c.b16 %v669, %v669
        %v678 = vpack.c.b16 %v670, %v670
        %687 = vst [vmem:[%s235] sm:$0xf] %v671
        %688 = vst [vmem:[%s235 + $0x4] sm:$0xf] %v672
        %689 = vst [vmem:[%s235 + $0x8] sm:$0xf] %v673
        %690 = vst [vmem:[%s235 + $0xc] sm:$0xf] %v674
        %691 = vst [vmem:[%s235 + $0x10] sm:$0xf] %v675
        %692 = vst [vmem:[%s235 + $0x14] sm:$0xf] %v676
        %693 = vst [vmem:[%s235 + $0x18] sm:$0xf] %v677
        %694 = vst [vmem:[%s235 + $0x1c] sm:$0xf] %v678
        %v695 = vadd.f32 %v625, %v628
        %v696 = vadd.f32 %v695, %v633
        %v697 = vadd.f32 %v696, %v636
        %v698 = vadd.f32 %v697, %v641
        %v699 = vadd.f32 %v698, %v644
        %v700 = vadd.f32 %v699, %v649
        %v701 = vadd.f32 %v700, %v652
        %v702 = vrot.slane %v701, 4
        %v703 = vadd.f32 %v701, %v702
        %v704 = vrot.slane %v703, 2
        %v705 = vadd.f32 %v703, %v704
        %v706 = vrot.slane %v705, 1
        %v707 = vadd.f32 %v705, %v706
        %v708 = vsel %vm271, %v625, 0.0
        %v709 = vrot.slane %v708, 4
        %v710 = vadd.f32 %v708, %v709
        %v711 = vrot.slane %v710, 2
        %v712 = vadd.f32 %v710, %v711
        %v713 = vrot.slane %v712, 1
        %v714 = vadd.f32 %v712, %v713
        %v715 = vadd.f32 %v707, %v714
        %v716 = vsel %vm271, %v641, 0.0
        %v717 = vrot.slane %v716, 4
        %v718 = vadd.f32 %v716, %v717
        %v719 = vrot.slane %v718, 2
        %v720 = vadd.f32 %v718, %v719
        %v721 = vrot.slane %v720, 1
        %v722 = vadd.f32 %v720, %v721
        %v723 = vadd.f32 %v715, %v722
        %v724 = vmul.f32 %v723, 0.014705882
        %v725 = vsub.f32 %v625, %v724
        %v726 = vsub.f32 %v628, %v724
        %v727 = vsub.f32 %v633, %v724
        %v728 = vsub.f32 %v636, %v724
        %v729 = vsub.f32 %v641, %v724
        %v730 = vsub.f32 %v644, %v724
        %v731 = vsub.f32 %v649, %v724
        %v732 = vsub.f32 %v652, %v724
        %v733 = vmul.f32 %v725, %v725
        %v734 = vmul.f32 %v726, %v726
        %v735 = vmul.f32 %v727, %v727
        %v736 = vmul.f32 %v728, %v728
        %v737 = vmul.f32 %v729, %v729
        %v738 = vmul.f32 %v730, %v730
        %v739 = vmul.f32 %v731, %v731
        %v740 = vmul.f32 %v732, %v732
        %v741 = vadd.f32 %v733, %v734
        %v742 = vadd.f32 %v741, %v735
        %v743 = vadd.f32 %v742, %v736
        %v744 = vadd.f32 %v743, %v737
        %v745 = vadd.f32 %v744, %v738
        %v746 = vadd.f32 %v745, %v739
        %v747 = vadd.f32 %v746, %v740
        %v748 = vrot.slane %v747, 4
        %v749 = vadd.f32 %v747, %v748
        %v750 = vrot.slane %v749, 2
        %v751 = vadd.f32 %v749, %v750
        %v752 = vrot.slane %v751, 1
        %v753 = vadd.f32 %v751, %v752
        %v754 = vsel %vm271, %v733, 0.0
        %v755 = vrot.slane %v754, 4
        %v756 = vadd.f32 %v754, %v755
        %v757 = vrot.slane %v756, 2
        %v758 = vadd.f32 %v756, %v757
        %v759 = vrot.slane %v758, 1
        %v760 = vadd.f32 %v758, %v759
        %v761 = vadd.f32 %v753, %v760
        %v762 = vsel %vm271, %v737, 0.0
        %v763 = vrot.slane %v762, 4
        %v764 = vadd.f32 %v762, %v763
        %v765 = vrot.slane %v764, 2
        %v766 = vadd.f32 %v764, %v765
        %v767 = vrot.slane %v766, 1
        %v768 = vadd.f32 %v766, %v767
        %v769 = vadd.f32 %v761, %v768
        %770 = vst [vmem:[%s241] sm:$0x1] %v723
        %771 = vst [vmem:[%s247] sm:$0x1] %v769
        %s772 = sand.u32 %s81, 1
        %s773 = scalar_lea.sflag [#allocation4], %s772
        %s774 = sand.u32 %s81, 1
        %s775 = smul.addr %s774, 32
        %s776 = scalar_lea.vmem [#allocation7], %s775
        %s777 = sand.u32 %s26, 1
        %s778 = scalar_lea.sflag [#allocation9], %s777
        %s779 = sand.u32 %s107, 1
        %s780 = scalar_lea.vmem [#allocation8], %s779
        %s781 = sand.u32 %s26, 1
        %s782 = scalar_lea.sflag [#allocation9], %s781
        %s783 = sand.u32 %s133, 1
        %s784 = scalar_lea.vmem [#allocation10], %s783
        // Predicated region
        $region37: #{tpu_custom_call.1} parent=27 // pred_check
          %p785 = pneg %p91
        $region38: #{tpu_custom_call.1} parent=27 // pred_check_branch
          %787 = sbr.rel (%p785) target = $region40
        $region39: #{tpu_custom_call.1} parent=27 // pred_region
          %s788 = smul.u32 8, %s26
          %s790 = ssub.s32 512, 512
          %791 = vsyncadd %s773, %s790
          %s792 = smul.addr %s788, 64
          %s793 = scalar_lea.hbm %s2, %s792
          %s794 = sshll.u32 %s776, 4
          %s795 = int_to_ptr.vmem [resolvable:$true] %s794
          %800 = dma.vmem_to_hbm [thread:$0]  %s795, 512, %s793, %s773, 64, 64, 4
        $region40: #{tpu_custom_call.1} parent=27 // pred_fallthru
          _
        // Predicated region
        $region41: #{tpu_custom_call.1} parent=27 // pred_check
          %p801 = pneg %p117
        $region42: #{tpu_custom_call.1} parent=27 // pred_check_branch
          %803 = sbr.rel (%p801) target = $region44
        $region43: #{tpu_custom_call.1} parent=27 // pred_region
          %s805 = ssub.s32 16, 16
          %806 = vsyncadd %s778, %s805
          %s807 = smul.addr %s26, 16
          %s808 = scalar_lea.hbm %s3, %s807
          %s810 = sshll.u32 %s780, 4
          %s811 = int_to_ptr.vmem [resolvable:$true] %s810
          %813 = dma.vmem_to_hbm [thread:$0]  %s811, 16, %s808, %s778
        $region44: #{tpu_custom_call.1} parent=27 // pred_fallthru
          _
        // Predicated region
        $region45: #{tpu_custom_call.1} parent=27 // pred_check
          %p814 = pneg %p143
        $region46: #{tpu_custom_call.1} parent=27 // pred_check_branch
          %816 = sbr.rel (%p814) target = $region48
        $region47: #{tpu_custom_call.1} parent=27 // pred_region
          %s818 = ssub.s32 16, 16
          %819 = vsyncadd %s782, %s818
          %s820 = smul.addr %s26, 16
          %s821 = scalar_lea.hbm %s4, %s820
          %s823 = sshll.u32 %s784, 4
          %s824 = int_to_ptr.vmem [resolvable:$true] %s823
          %826 = dma.vmem_to_hbm [thread:$0]  %s824, 16, %s821, %s782
        $region48: #{tpu_custom_call.1} parent=27 // pred_fallthru
          _
      $region28: #{tpu_custom_call.1} parent=5 // pred_fallthru
        _
      %p827 = scmp.le.s32.totalorder 2, %s21
      // Predicated region
      $region49: #{tpu_custom_call.1} parent=5 // pred_check
        %p828 = pneg %p827
      $region50: #{tpu_custom_call.1} parent=5 // pred_check_branch
        %830 = sbr.rel (%p828) target = $region52
      $region51: #{tpu_custom_call.1} parent=5 // pred_region
        %s831 = ssub.s32 %s21, 2
        // Predicated region
        $region53: #{tpu_custom_call.1} parent=51 // pred_check
          %p832 = pneg %p97
        $region54: #{tpu_custom_call.1} parent=51 // pred_check_branch
          %834 = sbr.rel (%p832) target = $region56
        $region55: #{tpu_custom_call.1} parent=51 // pred_region
          %s835 = sand.u32 %s82, 1
          %s836 = scalar_lea.sflag [#allocation4], %s835
          %s837 = sand.u32 %s82, 1
          %s838 = smul.addr %s837, 32
          %s839 = scalar_lea.vmem [#allocation7], %s838
          %840 = dma.done %s836, 512
        $region56: #{tpu_custom_call.1} parent=51 // pred_fallthru
          _
        // Predicated region
        $region57: #{tpu_custom_call.1} parent=51 // pred_check
          %p841 = pneg %p123
        $region58: #{tpu_custom_call.1} parent=51 // pred_check_branch
          %843 = sbr.rel (%p841) target = $region60
        $region59: #{tpu_custom_call.1} parent=51 // pred_region
          %s844 = sand.u32 %s27, 1
          %s845 = scalar_lea.sflag [#allocation9], %s844
          %s846 = sand.u32 %s108, 1
          %s847 = scalar_lea.vmem [#allocation8], %s846
          %848 = dma.done %s845, 16
        $region60: #{tpu_custom_call.1} parent=51 // pred_fallthru
          _
        // Predicated region
        $region61: #{tpu_custom_call.1} parent=51 // pred_check
          %p849 = pneg %p149
        $region62: #{tpu_custom_call.1} parent=51 // pred_check_branch
          %851 = sbr.rel (%p849) target = $region64
        $region63: #{tpu_custom_call.1} parent=51 // pred_region
          %s852 = sand.u32 %s27, 1
          %s853 = scalar_lea.sflag [#allocation9], %s852
          %s854 = sand.u32 %s134, 1
          %s855 = scalar_lea.vmem [#allocation10], %s854
          %856 = dma.done %s853, 16
        $region64: #{tpu_custom_call.1} parent=51 // pred_fallthru
          _
      $region52: #{tpu_custom_call.1} parent=5 // pred_fallthru
        _
    $region6: #{tpu_custom_call.1} parent=1 // loop_footer
      %s25 = sadd.s32 1, %s21
    $region7: #{tpu_custom_call.1} parent=1 // loop_footer_branch
      %20 = sbr.rel target = $region3
    $region8: #{tpu_custom_call.1} parent=1 // loop_exit
      _
    %857 = vsyncpa [#allocation3], 1
    %s858 = scalar_lea.sflag [#allocation3], 1
    %859 = vsyncpa %s858, 1
    %860 = vsyncpa [#allocation6], 1
    %861 = vsyncpa [#allocation4], 1
    %s862 = scalar_lea.sflag [#allocation4], 1
    %863 = vsyncpa %s862, 1
    %864 = vsyncpa [#allocation9], 1
    %s865 = scalar_lea.sflag [#allocation9], 1
    %866 = vsyncpa %s865, 1

</llo_original>
